<compile_context>
chip_gen: v7x
topology: tpu7x:2x2x1
jax: 0.10.0
libtpu: 0.0.40
codegen_flags: <defaults>
</compile_context>

<pallas_src>
import functools

import jax
import jax.numpy as jnp
import numpy as np
from jax import lax
from jax.experimental import pallas as pl
from jax.experimental.pallas import tpu as pltpu

_LC = 128  # prefix-count / gather chunk width (lane count)


def _pad_up(x, m):
    return ((x + m - 1) // m) * m


def _block_vmem_bytes(rows, cols, dtype_bytes=4):
    # VMEM stores blocks in (8, 128) tiles.
    return _pad_up(max(rows, 1), 8) * _pad_up(max(cols, 1), 128) * dtype_bytes


def _vmem_budget_bytes(tp, npad, ct1, nsample):
    ct = ct1 - 1
    b = 0
    b += 2 * _block_vmem_bytes(tp, 3)                 # new_xyz block (double buffered)
    b += 2 * _block_vmem_bytes(3, npad)               # xyz_t block (resident, dbl buf)
    b += 2 * _block_vmem_bytes(ct1, npad)             # points_aug block (resident, dbl buf)
    b += 2 * nsample * _block_vmem_bytes(ct, tp)      # output block (double buffered)
    b += nsample * _block_vmem_bytes(ct1, tp)         # gather accumulator scratch
    b += 12 * _block_vmem_bytes(tp, _LC)              # live chunk temporaries (pos/sel/...)
    b += _block_vmem_bytes(_LC, _LC, 2)               # bf16 tri constant
    return b


def _choose_tile_p(P, npad, ct1, nsample, usable_vmem):
    cands = [c for c in (512, 256, 128) if P % c == 0]
    if not cands:
        return P  # small / odd P: one full-width tile (block == full dim is legal)
    for c in cands:                                    # descending
        if _vmem_budget_bytes(c, npad, ct1, nsample) <= usable_vmem:
            return c
    return cands[-1]                                   # best effort


def _query_and_group_kernel(nxyz_ref, xyzt_ref, ptsa_ref, out_ref, acc_ref,
                            *, radius, nsample):
    # Per-grid-step blocks (batch dim squeezed):
    #   nxyz_ref : (TP, 3)        ball-center tile
    #   xyzt_ref : (3, Npad)      all points, channel-major (resident across P tiles)
    #   ptsa_ref : (Ct+1, Npad)   [xyz?; features; ones], channel-major (resident)
    #   out_ref  : (nsample, Ct, TP)   lane dim = TP (dense stores)
    #   acc_ref  : VMEM scratch (nsample, Ct+1, TP) f32  per-slot gather accumulators
    TP = nxyz_ref.shape[0]
    Npad = xyzt_ref.shape[1]
    Ct1 = ptsa_ref.shape[0]
    Ct = Ct1 - 1
    nchunks = Npad // _LC
    r2 = radius * radius

    acc_ref[...] = jnp.zeros_like(acc_ref)

    # 0/1 inclusive lower-triangular prefix matrix (bf16 is exact for 0/1).
    row = lax.broadcasted_iota(jnp.int32, (_LC, _LC), 0)
    col = lax.broadcasted_iota(jnp.int32, (_LC, _LC), 1)
    tri = (row <= col).astype(jnp.bfloat16)            # (128, 128)

    def chunk_body(c, carry):
        off = pl.multiple_of(c * _LC, _LC)
        x_c = xyzt_ref[:, pl.ds(off, _LC)]             # (3, LC)

        # Squared distance by direct differences (avoids the cancellation of
        # the ||c||^2 + ||x||^2 - 2 c.x expansion for large coordinates).
        d0 = nxyz_ref[:, 0:1] - x_c[0:1, :]            # (TP, LC)
        d1 = nxyz_ref[:, 1:2] - x_c[1:2, :]
        d2 = nxyz_ref[:, 2:3] - x_c[2:3, :]
        dist2 = d0 * d0 + d1 * d1 + d2 * d2
        mask = dist2 < r2                              # (TP, LC) bool

        # Inclusive match rank: bf16 0/1 matmul on the MXU, f32 accumulation.
        # Exact while per-row match counts stay below 2^24.
        cnt = jnp.dot(mask.astype(jnp.bfloat16), tri,
                      preferred_element_type=jnp.float32) + carry   # (TP, LC)
        pos = jnp.where(mask, cnt - 1.0, -1.0)         # 0-based rank, -1 if no match
        new_carry = cnt[:, _LC - 1:_LC]                # inclusive => carry + chunk count

        p_c = ptsa_ref[:, pl.ds(off, _LC)]             # (Ct1, LC) f32 (last row = ones)

        # One-hot gather accumulated per slot.  sel is exactly 0/1; the points
        # are arbitrary f32, so this matmul stays f32 for exactness.
        def slot_body(s, _):
            sf = s.astype(jnp.float32)
            sel = (pos == sf).astype(jnp.float32)      # (TP, LC), <=1 one per row
            g = lax.dot_general(p_c, sel, (((1,), (1,)), ((), ())),
                                preferred_element_type=jnp.float32)  # (Ct1, TP)
            acc_ref[s] = acc_ref[s] + g
            return 0

        lax.fori_loop(0, nsample, slot_body, 0, unroll=min(8, nsample))
        return new_carry

    lax.fori_loop(0, nchunks, chunk_body, jnp.zeros((TP, 1), jnp.float32))

    # Finalize: row Ct (appended ones channel) of each accumulator is the exact
    # 0/1 "slot filled" flag.  Empty slots repeat the first match; empty balls
    # fall back to point 0 (CUDA ball_query zero-initializes its index buffer).
    pts_col0 = ptsa_ref[:, 0:1]                        # (Ct1, 1) point-0 fallback
    g0 = acc_ref[0]                                    # (Ct1, TP)
    w0 = g0[Ct:Ct1, :]                                 # (1, TP), exactly 0/1
    fb = g0 * w0 + pts_col0 * (1.0 - w0)               # (Ct1, TP) first match / point 0
    out_ref[0] = fb[:Ct, :].astype(out_ref.dtype)

    def fin_body(s, _):
        g = acc_ref[s]
        w = g[Ct:Ct1, :]
        res = g * w + fb * (1.0 - w)
        out_ref[s] = res[:Ct, :].astype(out_ref.dtype)
        return 0

    lax.fori_loop(1, nsample, fin_body, 0)


def query_and_group(radius, nsample, xyz, new_xyz, features=None, use_xyz=True):
    """Pallas TPU QueryAndGroup forward.

    xyz      : (B, N, 3) float32
    new_xyz  : (B, P, 3) float32
    features : (B, C, N) float32 or None
    returns  : (B, 3 + C, P, nsample)  (or (B, C, P, nsample) if use_xyz=False,
               or (B, 3, P, nsample) if features is None)
    """
    xyz = xyz.astype(jnp.float32)
    new_xyz = new_xyz.astype(jnp.float32)
    B, N, _ = xyz.shape
    P = new_xyz.shape[1]
    nsample = int(nsample)
    radius = float(radius)

    xyz_t = jnp.transpose(xyz, (0, 2, 1))                          # (B, 3, N)
    if features is not None:
        feats = features.astype(jnp.float32)                       # (B, C, N)
        points_t = jnp.concatenate([xyz_t, feats], axis=1) if use_xyz else feats
    else:
        assert use_xyz, "Cannot have no features and not use xyz as a feature!"
        points_t = xyz_t
    Ct = points_t.shape[1]

    # Pad N to a multiple of 128 with far-away dummy points (never inside any
    # ball, never gathered); keeps the in-kernel chunking lane-aligned.
    Npad = _pad_up(N, _LC)
    if Npad != N:
        pad = Npad - N
        xyz_t = jnp.concatenate(
            [xyz_t, jnp.full((B, 3, pad), 1e6, jnp.float32)], axis=2)
        points_t = jnp.concatenate(
            [points_t, jnp.zeros((B, Ct, pad), jnp.float32)], axis=2)
    # Append a ones channel: its gathered value is the per-slot "filled" flag.
    points_aug = jnp.concatenate(
        [points_t, jnp.ones((B, 1, Npad), jnp.float32)], axis=1)   # (B, Ct+1, Npad)
    Ct1 = Ct + 1

    # VMEM-aware tiling (64 MiB/TC on v7x, 128 MiB on v5e/v6e).
    try:
        info = pltpu.get_tpu_info()
        vmem_cap = int(getattr(info, "vmem_capacity_bytes", 64 * 1024 * 1024))
    except Exception:  # pragma: no cover - conservative fallback
        vmem_cap = 64 * 1024 * 1024
    usable = int(vmem_cap * 0.7)                        # headroom for compiler scratch

    TP = _choose_tile_p(P, Npad, Ct1, nsample, usable)
    budget = _vmem_budget_bytes(TP, Npad, Ct1, nsample)
    vmem_limit = int(min(vmem_cap, max(32 * 1024 * 1024, budget + 8 * 1024 * 1024)))

    grid = (B, P // TP)
    kernel = functools.partial(
        _query_and_group_kernel, radius=radius, nsample=nsample)

    flops = int(2 * B * P * Npad * (_LC + nsample * Ct1) + 10 * B * P * Npad)
    bytes_accessed = int(4 * (new_xyz.size + xyz_t.size + points_aug.size
                              + B * nsample * Ct * P))

    out = pl.pallas_call(
        kernel,
        out_shape=jax.ShapeDtypeStruct((B, nsample, Ct, P), jnp.float32),
        grid_spec=pltpu.PrefetchScalarGridSpec(
            num_scalar_prefetch=0,
            grid=grid,
            in_specs=[
                pl.BlockSpec((None, TP, 3), lambda b, p: (b, p, 0)),
                pl.BlockSpec((None, 3, Npad), lambda b, p: (b, 0, 0)),
                pl.BlockSpec((None, Ct1, Npad), lambda b, p: (b, 0, 0)),
            ],
            out_specs=pl.BlockSpec((None, nsample, Ct, TP),
                                   lambda b, p: (b, 0, 0, p)),
            scratch_shapes=[pltpu.VMEM((nsample, Ct1, TP), jnp.float32)],
        ),
        compiler_params=pltpu.CompilerParams(
            dimension_semantics=("parallel", "parallel"),
            vmem_limit_bytes=vmem_limit),
        cost_estimate=pl.CostEstimate(flops=flops, transcendentals=0,
                                      bytes_accessed=bytes_accessed),
    )(new_xyz, xyz_t, points_aug)

    # (B, nsample, Ct, P) -> (B, Ct, P, nsample); center the xyz channels
    # (elementwise, fused by XLA with the layout change).
    new_features = jnp.transpose(out, (0, 2, 3, 1))
    if use_xyz or features is None:
        centers = jnp.transpose(new_xyz, (0, 2, 1))[:, :, :, None]  # (B, 3, P, 1)
        new_features = jnp.concatenate(
            [new_features[:, :3] - centers, new_features[:, 3:]], axis=1)
    return new_features


def _reference(radius, nsample, xyz, new_xyz, features, use_xyz=True):
    """Pure-JAX reference reproducing the CUDA ball_query + group_points semantics."""
    B, N, _ = xyz.shape
    dist2 = jnp.sum((new_xyz[:, :, None, :] - xyz[:, None, :, :]) ** 2, axis=-1)
    mask = dist2 < radius * radius
    cnt = jnp.cumsum(mask.astype(jnp.int32), axis=-1)
    pos = jnp.where(mask, cnt - 1, -1)
    k = jnp.arange(N)
    idx_cols = []
    first = None
    for s in range(nsample):
        sel = mask & (pos == s)
        idx_s = jnp.sum(jnp.where(sel, k, 0), axis=-1)
        has_s = jnp.any(sel, axis=-1)
        if s == 0:
            first = idx_s
        idx_cols.append(jnp.where(has_s, idx_s, first))
    idx = jnp.stack(idx_cols, axis=-1)                     # (B, P, nsample)

    bidx = jnp.arange(B)[:, None, None]
    xyz_t = jnp.transpose(xyz, (0, 2, 1))                  # (B, 3, N)
    grouped_xyz = xyz_t[bidx, :, idx]                      # (B, P, nsample, 3)
    grouped_xyz = jnp.transpose(grouped_xyz, (0, 3, 1, 2)) # (B, 3, P, nsample)
    grouped_xyz = grouped_xyz - jnp.transpose(new_xyz, (0, 2, 1))[..., None]
    if features is not None:
        gf = features[bidx, :, idx]                        # (B, P, nsample, C)
        gf = jnp.transpose(gf, (0, 3, 1, 2))               # (B, C, P, nsample)
        if use_xyz:
            return jnp.concatenate([grouped_xyz, gf], axis=1)
        return gf
    return grouped_xyz


if __name__ == "__main__":
    B, N, P, C, NSAMPLE = 2, 16, 8, 4, 4
    RADIUS = 0.5

    key = jax.random.PRNGKey(0)
    k1, k2 = jax.random.split(key, 2)
    xyz = jax.random.uniform(k1, (B, N, 3), dtype=jnp.float32)
    new_xyz = xyz[:, :P, :]                                 # centers = subset of points
    features = jax.random.normal(k2, (B, C, N), dtype=jnp.float32)

    # use_xyz=True with features
    out = query_and_group(RADIUS, NSAMPLE, xyz, new_xyz, features, use_xyz=True)
    out = jax.block_until_ready(out)
    assert out.shape == (B, 3 + C, P, NSAMPLE), out.shape
    ref = _reference(RADIUS, NSAMPLE, xyz, new_xyz, features, use_xyz=True)
    np.testing.assert_allclose(np.asarray(out), np.asarray(ref), rtol=1e-5, atol=1e-5)

    # features=None (xyz only)
    out2 = jax.block_until_ready(
        query_and_group(RADIUS, NSAMPLE, xyz, new_xyz, None, use_xyz=True))
    ref2 = _reference(RADIUS, NSAMPLE, xyz, new_xyz, None, use_xyz=True)
    np.testing.assert_allclose(np.asarray(out2), np.asarray(ref2), rtol=1e-5, atol=1e-5)

    # use_xyz=False with features
    out3 = jax.block_until_ready(
        query_and_group(RADIUS, NSAMPLE, xyz, new_xyz, features, use_xyz=False))
    ref3 = _reference(RADIUS, NSAMPLE, xyz, new_xyz, features, use_xyz=False)
    np.testing.assert_allclose(np.asarray(out3), np.asarray(ref3), rtol=1e-5, atol=1e-5)

    print("KERNEL_OK")
</pallas_src>

<mosaic_0001>
module attributes {stable_mosaic.version = 11 : i64} {
  func.func @_query_and_group_kernel(%arg0: i32, %arg1: i32, %arg2: memref<1x8x3xf32, #tpu.memory_space<vmem>>, %arg3: memref<1x3x128xf32, #tpu.memory_space<vmem>>, %arg4: memref<1x8x128xf32, #tpu.memory_space<vmem>>, %arg5: memref<1x4x7x8xf32, #tpu.memory_space<vmem>>, %arg6: memref<4x8x8xf32, #tpu.memory_space<vmem>>) attributes {dimension_semantics = [#tpu.dimension_semantics<parallel>, #tpu.dimension_semantics<parallel>], iteration_bounds = array<i64: 2, 1>, scalar_prefetch = 0 : i64, scratch_operands = 1 : i64, tpu.core_type = #tpu.core_type<tc>, window_params = [{transform_indices = @transform_0, window_bounds = array<i64: 1, 8, 3>}, {transform_indices = @transform_1, window_bounds = array<i64: 1, 3, 128>}, {transform_indices = @transform_2, window_bounds = array<i64: 1, 8, 128>}, {transform_indices = @transform_3, window_bounds = array<i64: 1, 4, 7, 8>}]} {
    %cst = arith.constant 0.000000e+00 : f32
    %0 = vector.broadcast %cst : f32 to vector<4x8x8xf32>
    %c0 = arith.constant 0 : index
    %c0_0 = arith.constant 0 : index
    %c0_1 = arith.constant 0 : index
    %1 = vector.load %arg6[%c0, %c0_0, %c0_1] : memref<4x8x8xf32, #tpu.memory_space<vmem>>, vector<4x8x8xf32>
    tpu.vector_store %arg6[%c0, %c0_0, %c0_1], %0 {strides = array<i32>} : memref<4x8x8xf32, #tpu.memory_space<vmem>>, vector<4x8x8xf32>,
    %2 = tpu.iota {dimensions = array<i32: 0>} : vector<128x128xi32>
    %3 = tpu.iota {dimensions = array<i32: 1>} : vector<128x128xi32>
    %4 = arith.cmpi sle, %2, %3 : vector<128x128xi32>
    %5 = arith.extui %4 : vector<128x128xi1> to vector<128x128xi32>
    %6 = arith.sitofp %5 : vector<128x128xi32> to vector<128x128xf32>
    %7 = arith.truncf %6 : vector<128x128xf32> to vector<128x128xbf16>
    %cst_2 = arith.constant 0.000000e+00 : f32
    %8 = vector.broadcast %cst_2 : f32 to vector<8x1xf32>
    %c0_i32 = arith.constant 0 : i32
    %c128_i32 = arith.constant 128 : i32
    %9 = arith.muli %c0_i32, %c128_i32 : i32
    %10 = tpu.assume_multiple %9, 128 : i32
    %c0_3 = arith.constant 0 : index
    %c0_4 = arith.constant 0 : index
    %11 = arith.index_cast %10 : i32 to index
    %12 = vector.load %arg3[%c0_3, %c0_4, %11] : memref<1x3x128xf32, #tpu.memory_space<vmem>>, vector<1x3x128xf32>
    %13 = vector.shape_cast %12 : vector<1x3x128xf32> to vector<3x128xf32>
    %c0_5 = arith.constant 0 : index
    %c0_6 = arith.constant 0 : index
    %c0_7 = arith.constant 0 : index
    %14 = vector.load %arg2[%c0_5, %c0_6, %c0_7] : memref<1x8x3xf32, #tpu.memory_space<vmem>>, vector<1x8x1xf32>
    %15 = vector.shape_cast %14 : vector<1x8x1xf32> to vector<8x1xf32>
    %16 = vector.extract_strided_slice %13 {offsets = [0, 0], sizes = [1, 128], strides = [1, 1]} : vector<3x128xf32> to vector<1x128xf32>
    %17 = vector.broadcast %15 : vector<8x1xf32> to vector<8x128xf32>
    %18 = vector.broadcast %16 : vector<1x128xf32> to vector<8x128xf32>
    %19 = arith.subf %17, %18 : vector<8x128xf32>
    %c0_8 = arith.constant 0 : index
    %c0_9 = arith.constant 0 : index
    %c1 = arith.constant 1 : index
    %20 = vector.load %arg2[%c0_8, %c0_9, %c1] : memref<1x8x3xf32, #tpu.memory_space<vmem>>, vector<1x8x1xf32>
    %21 = vector.shape_cast %20 : vector<1x8x1xf32> to vector<8x1xf32>
    %22 = vector.extract_strided_slice %13 {offsets = [1, 0], sizes = [1, 128], strides = [1, 1]} : vector<3x128xf32> to vector<1x128xf32>
    %23 = vector.broadcast %21 : vector<8x1xf32> to vector<8x128xf32>
    %24 = vector.broadcast %22 : vector<1x128xf32> to vector<8x128xf32>
    %25 = arith.subf %23, %24 : vector<8x128xf32>
    %c0_10 = arith.constant 0 : index
    %c0_11 = arith.constant 0 : index
    %c2 = arith.constant 2 : index
    %26 = vector.load %arg2[%c0_10, %c0_11, %c2] : memref<1x8x3xf32, #tpu.memory_space<vmem>>, vector<1x8x1xf32>
    %27 = vector.shape_cast %26 : vector<1x8x1xf32> to vector<8x1xf32>
    %28 = vector.extract_strided_slice %13 {offsets = [2, 0], sizes = [1, 128], strides = [1, 1]} : vector<3x128xf32> to vector<1x128xf32>
    %29 = vector.broadcast %27 : vector<8x1xf32> to vector<8x128xf32>
    %30 = vector.broadcast %28 : vector<1x128xf32> to vector<8x128xf32>
    %31 = arith.subf %29, %30 : vector<8x128xf32>
    %32 = arith.mulf %19, %19 : vector<8x128xf32>
    %33 = arith.mulf %25, %25 : vector<8x128xf32>
    %34 = arith.addf %32, %33 : vector<8x128xf32>
    %35 = arith.mulf %31, %31 : vector<8x128xf32>
    %36 = arith.addf %34, %35 : vector<8x128xf32>
    %cst_12 = arith.constant 2.500000e-01 : f32
    %37 = vector.broadcast %cst_12 : f32 to vector<8x128xf32>
    %38 = arith.cmpf olt, %36, %37 : vector<8x128xf32>
    %39 = arith.extui %38 : vector<8x128xi1> to vector<8x128xi32>
    %40 = arith.sitofp %39 : vector<8x128xi32> to vector<8x128xf32>
    %41 = arith.truncf %40 : vector<8x128xf32> to vector<8x128xbf16>
    %cst_13 = arith.constant dense<0.000000e+00> : vector<8x128xf32>
    %42 = tpu.matmul %41, %7, %cst_13 {dimension_numbers = #tpu.dot_dimension_numbers<[1], [0], [0], [1], [0, 0, 1, 1], [], []>} : vector<8x128xbf16>, vector<128x128xbf16>, vector<8x128xf32> -> vector<8x128xf32>
    %43 = vector.broadcast %8 : vector<8x1xf32> to vector<8x128xf32>
    %44 = arith.addf %42, %43 : vector<8x128xf32>
    %cst_14 = arith.constant 1.000000e+00 : f32
    %45 = vector.broadcast %cst_14 : f32 to vector<8x128xf32>
    %46 = arith.subf %44, %45 : vector<8x128xf32>
    %cst_15 = arith.constant -1.000000e+00 : f32
    %47 = vector.broadcast %cst_15 : f32 to vector<8x128xf32>
    %48 = arith.select %38, %46, %47 : vector<8x128xi1>, vector<8x128xf32>
    %49 = vector.extract_strided_slice %44 {offsets = [0, 127], sizes = [8, 1], strides = [1, 1]} : vector<8x128xf32> to vector<8x1xf32>
    %c0_16 = arith.constant 0 : index
    %c0_17 = arith.constant 0 : index
    %50 = arith.index_cast %10 : i32 to index
    %51 = vector.load %arg4[%c0_16, %c0_17, %50] : memref<1x8x128xf32, #tpu.memory_space<vmem>>, vector<1x8x128xf32>
    %52 = vector.shape_cast %51 : vector<1x8x128xf32> to vector<8x128xf32>
    %c0_i32_18 = arith.constant 0 : i32
    %53 = arith.sitofp %c0_i32_18 : i32 to f32
    %54 = vector.broadcast %53 : f32 to vector<8x128xf32>
    %55 = arith.cmpf oeq, %48, %54 : vector<8x128xf32>
    %56 = arith.extui %55 : vector<8x128xi1> to vector<8x128xi32>
    %57 = arith.sitofp %56 : vector<8x128xi32> to vector<8x128xf32>
    %cst_19 = arith.constant dense<0.000000e+00> : vector<8x8xf32>
    %58 = tpu.matmul %52, %57, %cst_19 {dimension_numbers = #tpu.dot_dimension_numbers<[1], [1], [0], [0], [0, 0, 1, 0], [], []>} : vector<8x128xf32>, vector<8x128xf32>, vector<8x8xf32> -> vector<8x8xf32>
    %59 = arith.index_cast %c0_i32_18 : i32 to index
    %c0_20 = arith.constant 0 : index
    %c0_21 = arith.constant 0 : index
    %60 = vector.load %arg6[%59, %c0_20, %c0_21] : memref<4x8x8xf32, #tpu.memory_space<vmem>>, vector<1x8x8xf32>
    %61 = vector.shape_cast %60 : vector<1x8x8xf32> to vector<8x8xf32>
    %62 = arith.addf %61, %58 : vector<8x8xf32>
    %63 = arith.index_cast %c0_i32_18 : i32 to index
    %c0_22 = arith.constant 0 : index
    %c0_23 = arith.constant 0 : index
    %64 = vector.load %arg6[%63, %c0_22, %c0_23] : memref<4x8x8xf32, #tpu.memory_space<vmem>>, vector<1x8x8xf32>
    %65 = vector.shape_cast %64 : vector<1x8x8xf32> to vector<8x8xf32>
    %66 = vector.shape_cast %62 : vector<8x8xf32> to vector<1x8x8xf32>
    tpu.vector_store %arg6[%63, %c0_22, %c0_23], %66 {strides = array<i32>} : memref<4x8x8xf32, #tpu.memory_space<vmem>>, vector<1x8x8xf32>,
    %c1_i32 = arith.constant 1 : i32
    %67 = arith.sitofp %c1_i32 : i32 to f32
    %68 = vector.broadcast %67 : f32 to vector<8x128xf32>
    %69 = arith.cmpf oeq, %48, %68 : vector<8x128xf32>
    %70 = arith.extui %69 : vector<8x128xi1> to vector<8x128xi32>
    %71 = arith.sitofp %70 : vector<8x128xi32> to vector<8x128xf32>
    %cst_24 = arith.constant dense<0.000000e+00> : vector<8x8xf32>
    %72 = tpu.matmul %52, %71, %cst_24 {dimension_numbers = #tpu.dot_dimension_numbers<[1], [1], [0], [0], [0, 0, 1, 0], [], []>} : vector<8x128xf32>, vector<8x128xf32>, vector<8x8xf32> -> vector<8x8xf32>
    %73 = arith.index_cast %c1_i32 : i32 to index
    %c0_25 = arith.constant 0 : index
    %c0_26 = arith.constant 0 : index
    %74 = vector.load %arg6[%73, %c0_25, %c0_26] : memref<4x8x8xf32, #tpu.memory_space<vmem>>, vector<1x8x8xf32>
    %75 = vector.shape_cast %74 : vector<1x8x8xf32> to vector<8x8xf32>
    %76 = arith.addf %75, %72 : vector<8x8xf32>
    %77 = arith.index_cast %c1_i32 : i32 to index
    %c0_27 = arith.constant 0 : index
    %c0_28 = arith.constant 0 : index
    %78 = vector.load %arg6[%77, %c0_27, %c0_28] : memref<4x8x8xf32, #tpu.memory_space<vmem>>, vector<1x8x8xf32>
    %79 = vector.shape_cast %78 : vector<1x8x8xf32> to vector<8x8xf32>
    %80 = vector.shape_cast %76 : vector<8x8xf32> to vector<1x8x8xf32>
    tpu.vector_store %arg6[%77, %c0_27, %c0_28], %80 {strides = array<i32>} : memref<4x8x8xf32, #tpu.memory_space<vmem>>, vector<1x8x8xf32>,
    %c2_i32 = arith.constant 2 : i32
    %81 = arith.sitofp %c2_i32 : i32 to f32
    %82 = vector.broadcast %81 : f32 to vector<8x128xf32>
    %83 = arith.cmpf oeq, %48, %82 : vector<8x128xf32>
    %84 = arith.extui %83 : vector<8x128xi1> to vector<8x128xi32>
    %85 = arith.sitofp %84 : vector<8x128xi32> to vector<8x128xf32>
    %cst_29 = arith.constant dense<0.000000e+00> : vector<8x8xf32>
    %86 = tpu.matmul %52, %85, %cst_29 {dimension_numbers = #tpu.dot_dimension_numbers<[1], [1], [0], [0], [0, 0, 1, 0], [], []>} : vector<8x128xf32>, vector<8x128xf32>, vector<8x8xf32> -> vector<8x8xf32>
    %87 = arith.index_cast %c2_i32 : i32 to index
    %c0_30 = arith.constant 0 : index
    %c0_31 = arith.constant 0 : index
    %88 = vector.load %arg6[%87, %c0_30, %c0_31] : memref<4x8x8xf32, #tpu.memory_space<vmem>>, vector<1x8x8xf32>
    %89 = vector.shape_cast %88 : vector<1x8x8xf32> to vector<8x8xf32>
    %90 = arith.addf %89, %86 : vector<8x8xf32>
    %91 = arith.index_cast %c2_i32 : i32 to index
    %c0_32 = arith.constant 0 : index
    %c0_33 = arith.constant 0 : index
    %92 = vector.load %arg6[%91, %c0_32, %c0_33] : memref<4x8x8xf32, #tpu.memory_space<vmem>>, vector<1x8x8xf32>
    %93 = vector.shape_cast %92 : vector<1x8x8xf32> to vector<8x8xf32>
    %94 = vector.shape_cast %90 : vector<8x8xf32> to vector<1x8x8xf32>
    tpu.vector_store %arg6[%91, %c0_32, %c0_33], %94 {strides = array<i32>} : memref<4x8x8xf32, #tpu.memory_space<vmem>>, vector<1x8x8xf32>,
    %c3_i32 = arith.constant 3 : i32
    %95 = arith.sitofp %c3_i32 : i32 to f32
    %96 = vector.broadcast %95 : f32 to vector<8x128xf32>
    %97 = arith.cmpf oeq, %48, %96 : vector<8x128xf32>
    %98 = arith.extui %97 : vector<8x128xi1> to vector<8x128xi32>
    %99 = arith.sitofp %98 : vector<8x128xi32> to vector<8x128xf32>
    %cst_34 = arith.constant dense<0.000000e+00> : vector<8x8xf32>
    %100 = tpu.matmul %52, %99, %cst_34 {dimension_numbers = #tpu.dot_dimension_numbers<[1], [1], [0], [0], [0, 0, 1, 0], [], []>} : vector<8x128xf32>, vector<8x128xf32>, vector<8x8xf32> -> vector<8x8xf32>
    %101 = arith.index_cast %c3_i32 : i32 to index
    %c0_35 = arith.constant 0 : index
    %c0_36 = arith.constant 0 : index
    %102 = vector.load %arg6[%101, %c0_35, %c0_36] : memref<4x8x8xf32, #tpu.memory_space<vmem>>, vector<1x8x8xf32>
    %103 = vector.shape_cast %102 : vector<1x8x8xf32> to vector<8x8xf32>
    %104 = arith.addf %103, %100 : vector<8x8xf32>
    %105 = arith.index_cast %c3_i32 : i32 to index
    %c0_37 = arith.constant 0 : index
    %c0_38 = arith.constant 0 : index
    %106 = vector.load %arg6[%105, %c0_37, %c0_38] : memref<4x8x8xf32, #tpu.memory_space<vmem>>, vector<1x8x8xf32>
    %107 = vector.shape_cast %106 : vector<1x8x8xf32> to vector<8x8xf32>
    %108 = vector.shape_cast %104 : vector<8x8xf32> to vector<1x8x8xf32>
    tpu.vector_store %arg6[%105, %c0_37, %c0_38], %108 {strides = array<i32>} : memref<4x8x8xf32, #tpu.memory_space<vmem>>, vector<1x8x8xf32>,
    %c4_i32 = arith.constant 4 : i32
    %c1_i32_39 = arith.constant 1 : i32
    %c0_40 = arith.constant 0 : index
    %c0_41 = arith.constant 0 : index
    %c0_42 = arith.constant 0 : index
    %109 = vector.load %arg4[%c0_40, %c0_41, %c0_42] : memref<1x8x128xf32, #tpu.memory_space<vmem>>, vector<1x8x1xf32>
    %110 = vector.shape_cast %109 : vector<1x8x1xf32> to vector<8x1xf32>
    %c0_43 = arith.constant 0 : index
    %c0_44 = arith.constant 0 : index
    %c0_45 = arith.constant 0 : index
    %111 = vector.load %arg6[%c0_43, %c0_44, %c0_45] : memref<4x8x8xf32, #tpu.memory_space<vmem>>, vector<1x8x8xf32>
    %112 = vector.shape_cast %111 : vector<1x8x8xf32> to vector<8x8xf32>
    %113 = vector.extract_strided_slice %112 {offsets = [7, 0], sizes = [1, 8], strides = [1, 1]} : vector<8x8xf32> to vector<1x8xf32>
    %114 = vector.broadcast %113 : vector<1x8xf32> to vector<8x8xf32>
    %115 = arith.mulf %112, %114 : vector<8x8xf32>
    %cst_46 = arith.constant 1.000000e+00 : f32
    %116 = vector.broadcast %cst_46 : f32 to vector<1x8xf32>
    %117 = arith.subf %116, %113 : vector<1x8xf32>
    %118 = vector.broadcast %110 : vector<8x1xf32> to vector<8x8xf32>
    %119 = vector.broadcast %117 : vector<1x8xf32> to vector<8x8xf32>
    %120 = arith.mulf %118, %119 : vector<8x8xf32>
    %121 = arith.addf %115, %120 : vector<8x8xf32>
    %122 = vector.extract_strided_slice %121 {offsets = [0, 0], sizes = [7, 8], strides = [1, 1]} : vector<8x8xf32> to vector<7x8xf32>
    %c0_47 = arith.constant 0 : index
    %c0_48 = arith.constant 0 : index
    %c0_49 = arith.constant 0 : index
    %c0_50 = arith.constant 0 : index
    %123 = vector.load %arg5[%c0_47, %c0_48, %c0_49, %c0_50] : memref<1x4x7x8xf32, #tpu.memory_space<vmem>>, vector<1x1x7x8xf32>
    %124 = vector.shape_cast %123 : vector<1x1x7x8xf32> to vector<7x8xf32>
    %125 = vector.shape_cast %122 : vector<7x8xf32> to vector<1x1x7x8xf32>
    tpu.vector_store %arg5[%c0_47, %c0_48, %c0_49, %c0_50], %125 {strides = array<i32>} : memref<1x4x7x8xf32, #tpu.memory_space<vmem>>, vector<1x1x7x8xf32>,
    %c1_i32_51 = arith.constant 1 : i32
    %c3_i32_52 = arith.constant 3 : i32
    %126 = arith.addi %c1_i32_51, %c3_i32_52 : i32
    %c1_i32_53 = arith.constant 1 : i32
    scf.for %arg7 = %c1_i32_51 to %126 step %c1_i32_53  : i32 {
      %127 = arith.index_cast %arg7 : i32 to index
      %c0_55 = arith.constant 0 : index
      %c0_56 = arith.constant 0 : index
      %128 = vector.load %arg6[%127, %c0_55, %c0_56] : memref<4x8x8xf32, #tpu.memory_space<vmem>>, vector<1x8x8xf32>
      %129 = vector.shape_cast %128 : vector<1x8x8xf32> to vector<8x8xf32>
      %130 = vector.extract_strided_slice %129 {offsets = [7, 0], sizes = [1, 8], strides = [1, 1]} : vector<8x8xf32> to vector<1x8xf32>
      %131 = vector.broadcast %130 : vector<1x8xf32> to vector<8x8xf32>
      %132 = arith.mulf %129, %131 : vector<8x8xf32>
      %cst_57 = arith.constant 1.000000e+00 : f32
      %133 = vector.broadcast %cst_57 : f32 to vector<1x8xf32>
      %134 = arith.subf %133, %130 : vector<1x8xf32>
      %135 = vector.broadcast %134 : vector<1x8xf32> to vector<8x8xf32>
      %136 = arith.mulf %121, %135 : vector<8x8xf32>
      %137 = arith.addf %132, %136 : vector<8x8xf32>
      %138 = vector.extract_strided_slice %137 {offsets = [0, 0], sizes = [7, 8], strides = [1, 1]} : vector<8x8xf32> to vector<7x8xf32>
      %c0_58 = arith.constant 0 : index
      %139 = arith.index_cast %arg7 : i32 to index
      %c0_59 = arith.constant 0 : index
      %c0_60 = arith.constant 0 : index
      %140 = vector.load %arg5[%c0_58, %139, %c0_59, %c0_60] : memref<1x4x7x8xf32, #tpu.memory_space<vmem>>, vector<1x1x7x8xf32>
      %141 = vector.shape_cast %140 : vector<1x1x7x8xf32> to vector<7x8xf32>
      %142 = vector.shape_cast %138 : vector<7x8xf32> to vector<1x1x7x8xf32>
      tpu.vector_store %arg5[%c0_58, %139, %c0_59, %c0_60], %142 {strides = array<i32>} : memref<1x4x7x8xf32, #tpu.memory_space<vmem>>, vector<1x1x7x8xf32>,
    }
    %c3_i32_54 = arith.constant 3 : i32
    return
  }
  func.func @transform_0(%arg0: i32, %arg1: i32) -> (i32, i32, i32) {
    %c0_i32 = arith.constant 0 : i32
    %c0_i32_0 = arith.constant 0 : i32
    return %arg0, %arg1, %c0_i32 : i32, i32, i32
  }
  func.func @transform_1(%arg0: i32, %arg1: i32) -> (i32, i32, i32) {
    %c0_i32 = arith.constant 0 : i32
    %c0_i32_0 = arith.constant 0 : i32
    %c0_i32_1 = arith.constant 0 : i32
    return %arg0, %c0_i32, %c0_i32_0 : i32, i32, i32
  }
  func.func @transform_2(%arg0: i32, %arg1: i32) -> (i32, i32, i32) {
    %c0_i32 = arith.constant 0 : i32
    %c0_i32_0 = arith.constant 0 : i32
    %c0_i32_1 = arith.constant 0 : i32
    return %arg0, %c0_i32, %c0_i32_0 : i32, i32, i32
  }
  func.func @transform_3(%arg0: i32, %arg1: i32) -> (i32, i32, i32, i32) {
    %c0_i32 = arith.constant 0 : i32
    %c0_i32_0 = arith.constant 0 : i32
    %c0_i32_1 = arith.constant 0 : i32
    return %arg0, %c0_i32, %c0_i32_0, %arg1 : i32, i32, i32, i32
  }
}

</mosaic_0001>

<llo_original>
// kernel: tpu_custom_call.1
$region0: #{tpu_custom_call.1}
  #allocation0 [shape = 'u32[]', space=smem, size = 0x4, offset = 0x4, fixed_abs, tag = 'smem constant byte address 0x4 - core index']
  #allocation1 [shape = 'u32[144,128]{1,0:T(1,128)}', space=vmem, size = 0x12000, scoped, tag = 'internal scratch']
  #allocation2 [shape = 'f32[4,8,8]{2,1,0:T(8,128)}', space=vmem, size = 0x4000, scoped, tag = 'scratch operand']
  %s0 = inlined_call_operand.vmem [shape: f32[2,8,3], index: 0, kind: input, shape index: {}]
  %s1 = inlined_call_operand.vmem [shape: f32[2,3,128], index: 1, kind: input, shape index: {}]
  %s2 = inlined_call_operand.vmem [shape: f32[2,8,128], index: 2, kind: input, shape index: {}]
  %s3 = inlined_call_operand.vmem [shape: f32[2,4,7,8], index: 3, kind: output, shape index: {}]
  %s4 = sld [smem:[#allocation0]]
  $region52: #{tpu_custom_call.1} parent=0
    _
  %s6 = ssub.s32 1, %s4
  %s7 = scalar_select 0, %s6, %s4
  loop: start=0, step=1, limit=4
  $region2: #{tpu_custom_call.1} parent=0 // loop_pre_header
    _
  $region3: #{tpu_custom_call.1} parent=0 // loop_header
    %s9 = sphi 0, %s13
    %p10 = scmp.ge.s32.totalorder %s9, 4
    %s16 = sphi 0, %s28
    %s17 = sphi 0, %s24
    %s18 = sphi 0, %s16
    %s19 = sphi 0, %s17
    %s20 = sphi 0, %s18
    %s21 = sphi 0, %s19
    %s33 = sphi 0, %s35
    %s36 = sphi 0, %s33
    %s37 = sphi 0, %s36
    %s53 = sphi 0, %s37
    %s59 = sphi 0, %s61
    %s62 = sphi 0, %s59
    %s63 = sphi 0, %s62
    %s79 = sphi 0, %s63
    %s85 = sphi 0, %s87
    %s88 = sphi 0, %s85
    %s89 = sphi 0, %s88
    %s105 = sphi 0, %s89
    %s113 = sphi 0, %s115
    %s116 = sphi 0, %s113
    %s117 = sphi 0, %s116
    %s133 = sphi 0, %s117
  $region4: #{tpu_custom_call.1} parent=0 // loop_header_branch
    %12 = sbr.rel (%p10) target = $region8
  $region5: #{tpu_custom_call.1} parent=0 // loop_body
    %s14 = ssub.s32 %s9, 1
    %s15 = ssub.s32 %s9, 2
    %s22 = sadd.s32 1, %s17
    %p23 = scmp.ge.s32.totalorder %s22, 1
    %s24 = scalar_select %p23, 0, %s22
    %s25 = sadd.s32 1, %s16
    %s26 = scalar_select %p23, %s25, %s16
    %p27 = scmp.ge.s32.totalorder %s26, 2
    %s28 = scalar_select %p27, 0, %s26
    %s29 = ssub.s32 %s16, %s28
    %s30 = ssub.s32 %s17, %s24
    %s31 = sor.u32 %s29, %s30
    %p32 = scmp.eq.s32.totalorder %s31, 0
    %s34 = sadd.s32 %s33, 1
    %s35 = scalar_select %p32, %s33, %s34
    %p38 = pneg %p32
    %p39 = scmp.eq.s32.totalorder %s9, 1
    %p40 = por %p38, %p39
    %p41 = scmp.ne.s32.totalorder %s33, %s36
    %p42 = scmp.eq.s32.totalorder %s9, 0
    %p43 = por %p41, %p42
    %p44 = scmp.ne.s32.totalorder %s33, %s36
    %p45 = scmp.eq.s32.totalorder %s14, 1
    %p46 = por %p44, %p45
    %p47 = scmp.ne.s32.totalorder %s36, %s37
    %p48 = scmp.eq.s32.totalorder %s14, 0
    %p49 = por %p47, %p48
    %p50 = scmp.ne.s32.totalorder %s36, %s37
    %p51 = scmp.eq.s32.totalorder %s15, 1
    %p52 = por %p50, %p51
    %p54 = scmp.ne.s32.totalorder %s37, %s53
    %p55 = scmp.eq.s32.totalorder %s15, 0
    %p56 = por %p54, %p55
    %s57 = ssub.s32 %s16, %s28
    %p58 = scmp.eq.s32.totalorder %s57, 0
    %s60 = sadd.s32 %s59, 1
    %s61 = scalar_select %p58, %s59, %s60
    %p64 = pneg %p58
    %p65 = scmp.eq.s32.totalorder %s9, 1
    %p66 = por %p64, %p65
    %p67 = scmp.ne.s32.totalorder %s59, %s62
    %p68 = scmp.eq.s32.totalorder %s9, 0
    %p69 = por %p67, %p68
    %p70 = scmp.ne.s32.totalorder %s59, %s62
    %p71 = scmp.eq.s32.totalorder %s14, 1
    %p72 = por %p70, %p71
    %p73 = scmp.ne.s32.totalorder %s62, %s63
    %p74 = scmp.eq.s32.totalorder %s14, 0
    %p75 = por %p73, %p74
    %p76 = scmp.ne.s32.totalorder %s62, %s63
    %p77 = scmp.eq.s32.totalorder %s15, 1
    %p78 = por %p76, %p77
    %p80 = scmp.ne.s32.totalorder %s63, %s79
    %p81 = scmp.eq.s32.totalorder %s15, 0
    %p82 = por %p80, %p81
    %s83 = ssub.s32 %s16, %s28
    %p84 = scmp.eq.s32.totalorder %s83, 0
    %s86 = sadd.s32 %s85, 1
    %s87 = scalar_select %p84, %s85, %s86
    %p90 = pneg %p84
    %p91 = scmp.eq.s32.totalorder %s9, 1
    %p92 = por %p90, %p91
    %p93 = scmp.ne.s32.totalorder %s85, %s88
    %p94 = scmp.eq.s32.totalorder %s9, 0
    %p95 = por %p93, %p94
    %p96 = scmp.ne.s32.totalorder %s85, %s88
    %p97 = scmp.eq.s32.totalorder %s14, 1
    %p98 = por %p96, %p97
    %p99 = scmp.ne.s32.totalorder %s88, %s89
    %p100 = scmp.eq.s32.totalorder %s14, 0
    %p101 = por %p99, %p100
    %p102 = scmp.ne.s32.totalorder %s88, %s89
    %p103 = scmp.eq.s32.totalorder %s15, 1
    %p104 = por %p102, %p103
    %p106 = scmp.ne.s32.totalorder %s89, %s105
    %p107 = scmp.eq.s32.totalorder %s15, 0
    %p108 = por %p106, %p107
    %s109 = ssub.s32 %s16, %s28
    %s110 = ssub.s32 %s17, %s24
    %s111 = sor.u32 %s109, %s110
    %p112 = scmp.eq.s32.totalorder %s111, 0
    %s114 = sadd.s32 %s113, 1
    %s115 = scalar_select %p112, %s113, %s114
    %p118 = pneg %p112
    %p119 = scmp.eq.s32.totalorder %s9, 1
    %p120 = por %p118, %p119
    %p121 = scmp.ne.s32.totalorder %s113, %s116
    %p122 = scmp.eq.s32.totalorder %s9, 0
    %p123 = por %p121, %p122
    %p124 = scmp.ne.s32.totalorder %s113, %s116
    %p125 = scmp.eq.s32.totalorder %s14, 1
    %p126 = por %p124, %p125
    %p127 = scmp.ne.s32.totalorder %s116, %s117
    %p128 = scmp.eq.s32.totalorder %s14, 0
    %p129 = por %p127, %p128
    %p130 = scmp.ne.s32.totalorder %s116, %s117
    %p131 = scmp.eq.s32.totalorder %s15, 1
    %p132 = por %p130, %p131
    %p134 = scmp.ne.s32.totalorder %s117, %s133
    %p135 = scmp.eq.s32.totalorder %s15, 0
    %p136 = por %p134, %p135
    %p137 = scmp.le.s32.totalorder 1, %s9
    %p138 = scmp.lt.s32.totalorder %s9, 3
    %p139 = pnand %p137, %p138
    %p140 = pneg %p139
    // Predicated region
    $region9: #{tpu_custom_call.1} parent=5 // pred_check
      _
    $region10: #{tpu_custom_call.1} parent=5 // pred_check_branch
      %142 = sbr.rel (%p139) target = $region12
    $region11: #{tpu_custom_call.1} parent=5 // pred_region
      %s143 = ssub.s32 %s9, 1
    $region12: #{tpu_custom_call.1} parent=5 // pred_fallthru
      _
    %p144 = scmp.lt.s32.totalorder %s9, 2
    // Predicated region
    $region13: #{tpu_custom_call.1} parent=5 // pred_check
      %p145 = pneg %p144
    $region14: #{tpu_custom_call.1} parent=5 // pred_check_branch
      %147 = sbr.rel (%p145) target = $region16
    $region15: #{tpu_custom_call.1} parent=5 // pred_region
      // Predicated region
      $region17: #{tpu_custom_call.1} parent=15 // pred_check
        %p148 = pneg %p43
      $region18: #{tpu_custom_call.1} parent=15 // pred_check_branch
        %150 = sbr.rel (%p148) target = $region20
      $region19: #{tpu_custom_call.1} parent=15 // pred_region
        %p151 = scmp.lt.s32.totalorder %s16, 1
        %s152 = scalar_select %p151, %s16, 1
        %p153 = scmp.lt.s32.totalorder %s17, 0
        %s154 = scalar_select %p153, %s17, 0
        %s155 = sadd.s32 %s154, %s152
        %s156 = smul.addr %s155, 8
        %s157 = scalar_lea.vmem %s0, %s156
      $region20: #{tpu_custom_call.1} parent=15 // pred_fallthru
        _
      // Predicated region
      $region21: #{tpu_custom_call.1} parent=15 // pred_check
        %p158 = pneg %p69
      $region22: #{tpu_custom_call.1} parent=15 // pred_check_branch
        %160 = sbr.rel (%p158) target = $region24
      $region23: #{tpu_custom_call.1} parent=15 // pred_region
        %p161 = scmp.lt.s32.totalorder %s16, 1
        %s162 = scalar_select %p161, %s16, 1
        %s163 = smul.addr %s162, 4
        %s164 = scalar_lea.vmem %s1, %s163
      $region24: #{tpu_custom_call.1} parent=15 // pred_fallthru
        _
      // Predicated region
      $region25: #{tpu_custom_call.1} parent=15 // pred_check
        %p165 = pneg %p95
      $region26: #{tpu_custom_call.1} parent=15 // pred_check_branch
        %167 = sbr.rel (%p165) target = $region28
      $region27: #{tpu_custom_call.1} parent=15 // pred_region
        %p168 = scmp.lt.s32.totalorder %s16, 1
        %s169 = scalar_select %p168, %s16, 1
        %s170 = smul.addr %s169, 8
        %s171 = scalar_lea.vmem %s2, %s170
      $region28: #{tpu_custom_call.1} parent=15 // pred_fallthru
        _
    $region16: #{tpu_custom_call.1} parent=5 // pred_fallthru
      _
    %p172 = scmp.le.s32.totalorder 1, %s9
    %p173 = scmp.lt.s32.totalorder %s9, 3
    %p174 = pnand %p172, %p173
    %p175 = pneg %p174
    // Predicated region
    $region29: #{tpu_custom_call.1} parent=5 // pred_check
      _
    $region30: #{tpu_custom_call.1} parent=5 // pred_check_branch
      %177 = sbr.rel (%p174) target = $region32
    $region31: #{tpu_custom_call.1} parent=5 // pred_region
      %s178 = ssub.s32 %s9, 1
      %p179 = scmp.lt.s32.totalorder %s18, 1
      %s180 = scalar_select %p179, %s18, 1
      %p181 = scmp.lt.s32.totalorder %s19, 0
      %s182 = scalar_select %p181, %s19, 0
      %s183 = sadd.s32 %s182, %s180
      %s184 = smul.addr %s183, 8
      %s185 = scalar_lea.vmem %s0, %s184
      %p186 = pneg %p49
      %p187 = pneg %p46
      %p188 = scmp.lt.s32.totalorder %s18, 1
      %s189 = scalar_select %p188, %s18, 1
      %s190 = smul.addr %s189, 4
      %s191 = scalar_lea.vmem %s1, %s190
      %p192 = pneg %p75
      %p193 = pneg %p72
      %p194 = scmp.lt.s32.totalorder %s18, 1
      %s195 = scalar_select %p194, %s18, 1
      %s196 = smul.addr %s195, 8
      %s197 = scalar_lea.vmem %s2, %s196
      %p198 = pneg %p101
      %p199 = pneg %p98
      %p200 = pneg %p129
      %p201 = pneg %p126
      %p202 = scmp.lt.s32.totalorder %s18, 1
      %s203 = scalar_select %p202, %s18, 1
      %p204 = scmp.lt.s32.totalorder %s19, 0
      %s205 = scalar_select %p204, %s19, 0
      %s206 = smul.addr %s203, 4
      %s207 = sadd.s32 %s205, %s206
      %s208 = smul.addr %s207, 8
      %s209 = scalar_lea.vmem %s3, %s208
      %p210 = scmp.lt.s32.totalorder %s18, 1
      %s211 = scalar_select %p210, %s18, 1
      %p212 = scmp.lt.s32.totalorder %s19, 0
      %s213 = scalar_select %p212, %s19, 0
      %s214 = sadd.s32 %s213, %s211
      %s215 = smul.addr %s214, 8
      %s216 = scalar_lea.vmem %s0, %s215
      %p217 = scmp.lt.s32.totalorder %s18, 1
      %s218 = scalar_select %p217, %s18, 1
      %s219 = smul.addr %s218, 4
      %s220 = scalar_lea.vmem %s1, %s219
      %p221 = scmp.lt.s32.totalorder %s18, 1
      %s222 = scalar_select %p221, %s18, 1
      %s223 = smul.addr %s222, 8
      %s224 = scalar_lea.vmem %s2, %s223
      %p225 = scmp.lt.s32.totalorder %s18, 1
      %s226 = scalar_select %p225, %s18, 1
      %p227 = scmp.lt.s32.totalorder %s19, 0
      %s228 = scalar_select %p227, %s19, 0
      %s229 = smul.addr %s226, 4
      %s230 = sadd.s32 %s228, %s229
      %s231 = smul.addr %s230, 8
      %s232 = scalar_lea.vmem %s3, %s231
      %vm234 = vcmask 64512
      %235 = vst.msk [vmem:[#allocation2] sm:$0xff] %vm234, 0.0
      %236 = vst.msk [vmem:[#allocation2 + $0x8] sm:$0xff] %vm234, 0.0
      %237 = vst.msk [vmem:[#allocation2 + $0x10] sm:$0xff] %vm234, 0.0
      %238 = vst.msk [vmem:[#allocation2 + $0x18] sm:$0xff] %vm234, 0.0
      %v239 = vlaneseq
      %v240 = vshrl.u32 %v239, 7
      %v241 = vadd.s32 %v240, 8
      %v242 = vadd.s32 %v240, 16
      %v243 = vadd.s32 %v240, 24
      %v244 = vadd.s32 %v240, 32
      %v245 = vadd.s32 %v240, 40
      %v246 = vadd.s32 %v240, 48
      %v247 = vadd.s32 %v240, 56
      %v248 = vadd.s32 %v240, 64
      %v249 = vadd.s32 %v240, 72
      %v250 = vadd.s32 %v240, 80
      %v251 = vadd.s32 %v240, 88
      %v252 = vadd.s32 %v240, 96
      %v253 = vadd.s32 %v240, 104
      %v254 = vadd.s32 %v240, 112
      %v255 = vadd.s32 %v240, 120
      %v256 = vlaneseq
      %v257 = vand.u32 %v256, 127
      %vm258 = vcmp.le.s32.totalorder %v240, %v257
      %vm259 = vcmp.le.s32.totalorder %v241, %v257
      %vm260 = vcmp.le.s32.totalorder %v242, %v257
      %vm261 = vcmp.le.s32.totalorder %v243, %v257
      %vm262 = vcmp.le.s32.totalorder %v244, %v257
      %vm263 = vcmp.le.s32.totalorder %v245, %v257
      %vm264 = vcmp.le.s32.totalorder %v246, %v257
      %vm265 = vcmp.le.s32.totalorder %v247, %v257
      %vm266 = vcmp.le.s32.totalorder %v248, %v257
      %vm267 = vcmp.le.s32.totalorder %v249, %v257
      %vm268 = vcmp.le.s32.totalorder %v250, %v257
      %vm269 = vcmp.le.s32.totalorder %v251, %v257
      %vm270 = vcmp.le.s32.totalorder %v252, %v257
      %vm271 = vcmp.le.s32.totalorder %v253, %v257
      %vm272 = vcmp.le.s32.totalorder %v254, %v257
      %vm273 = vcmp.le.s32.totalorder %v255, %v257
      %v274 = vsel %vm258, 1, 0
      %v275 = vsel %vm259, 1, 0
      %v276 = vsel %vm260, 1, 0
      %v277 = vsel %vm261, 1, 0
      %v278 = vsel %vm262, 1, 0
      %v279 = vsel %vm263, 1, 0
      %v280 = vsel %vm264, 1, 0
      %v281 = vsel %vm265, 1, 0
      %v282 = vsel %vm266, 1, 0
      %v283 = vsel %vm267, 1, 0
      %v284 = vsel %vm268, 1, 0
      %v285 = vsel %vm269, 1, 0
      %v286 = vsel %vm270, 1, 0
      %v287 = vsel %vm271, 1, 0
      %v288 = vsel %vm272, 1, 0
      %v289 = vsel %vm273, 1, 0
      %v290 = vcvt.s32.f32 %v274
      %v291 = vcvt.s32.f32 %v275
      %v292 = vcvt.s32.f32 %v276
      %v293 = vcvt.s32.f32 %v277
      %v294 = vcvt.s32.f32 %v278
      %v295 = vcvt.s32.f32 %v279
      %v296 = vcvt.s32.f32 %v280
      %v297 = vcvt.s32.f32 %v281
      %v298 = vcvt.s32.f32 %v282
      %v299 = vcvt.s32.f32 %v283
      %v300 = vcvt.s32.f32 %v284
      %v301 = vcvt.s32.f32 %v285
      %v302 = vcvt.s32.f32 %v286
      %v303 = vcvt.s32.f32 %v287
      %v304 = vcvt.s32.f32 %v288
      %v305 = vcvt.s32.f32 %v289
      %v306 = vpack.c.bf16 %v291, %v290
      %v307 = vpack.c.bf16 %v293, %v292
      %v308 = vpack.c.bf16 %v295, %v294
      %v309 = vpack.c.bf16 %v297, %v296
      %v310 = vpack.c.bf16 %v299, %v298
      %v311 = vpack.c.bf16 %v301, %v300
      %v312 = vpack.c.bf16 %v303, %v302
      %v313 = vpack.c.bf16 %v305, %v304
      %v314 = vld [vmem:[%s220] sm:$0x7]
      %v315 = vld [vmem:[%s216] sm:$0xff]
      %317 = vset.pattern.permute.xlu0 0
      %318 = vperm.xlu0 %317, %v315
      %v319 = vpop.permute.xlu0 %318
      %v321 = vlaneseq
      %v322 = vshrl.u32 %v321, 7
      %v323 = vsub.s32 0, %v322
      %v324 = vrot.slane %v314, %v323
      %v325 = vsub.f32 %v319, %v324
      %326 = vset.pattern.permute.xlu0 1
      %327 = vperm.xlu0 %326, %v315
      %v328 = vpop.permute.xlu0 %327
      %v330 = vlaneseq
      %v331 = vshrl.u32 %v330, 7
      %v332 = vsub.s32 1, %v331
      %v333 = vrot.slane %v314, %v332
      %v334 = vsub.f32 %v328, %v333
      %335 = vset.pattern.permute.xlu0 2
      %336 = vperm.xlu0 %335, %v315
      %v337 = vpop.permute.xlu0 %336
      %v339 = vlaneseq
      %v340 = vshrl.u32 %v339, 7
      %v341 = vsub.s32 2, %v340
      %v342 = vrot.slane %v314, %v341
      %v343 = vsub.f32 %v337, %v342
      %v344 = vmul.f32 %v325, %v325
      %v345 = vmul.f32 %v334, %v334
      %v346 = vadd.f32 %v344, %v345
      %v347 = vmul.f32 %v343, %v343
      %v348 = vadd.f32 %v346, %v347
      %vm349 = vcmp.lt.f32.partialorder %v348, 0.25
      %v350 = vsel %vm349, 1, 0
      %v351 = vcvt.s32.f32 %v350
      %v352 = vpack.c.bf16 %v351, %v351
      %353 = vmatprep.subr.bf16.mxu0 0
      %354 = vmatpush1.bf16.msra.mxu0 %v306
      %355 = vmatprep.subr.bf16.mxu0 0
      %356 = vmatpush1.bf16.msra.mxu0 %v307
      %357 = vmatprep.subr.bf16.mxu0 0
      %358 = vmatpush1.bf16.msra.mxu0 %v308
      %359 = vmatprep.subr.bf16.mxu0 0
      %360 = vmatpush1.bf16.msra.mxu0 %v309
      %361 = vmatprep.subr.bf16.mxu0 0
      %362 = vmatpush1.bf16.msra.mxu0 %v310
      %363 = vmatprep.subr.bf16.mxu0 0
      %364 = vmatpush1.bf16.msra.mxu0 %v311
      %365 = vmatprep.subr.bf16.mxu0 0
      %366 = vmatpush1.bf16.msra.mxu0 %v312
      %367 = vmatprep.subr.bf16.mxu0 0
      %368 = vmatpush1.bf16.msra.mxu0 %v313
      %369 = vmatprep.subr.bf16.mxu0 0
      %370 = vmatpush1.bf16.msra.mxu0 0
      %371 = vmatprep.subr.bf16.mxu0 0
      %372 = vmatpush1.bf16.msra.mxu0 0
      %373 = vmatprep.subr.bf16.mxu0 0
      %374 = vmatpush1.bf16.msra.mxu0 0
      %375 = vmatprep.subr.bf16.mxu0 0
      %376 = vmatpush1.bf16.msra.mxu0 0
      %377 = vmatprep.subr.bf16.mxu0 0
      %378 = vmatpush1.bf16.msra.mxu0 0
      %379 = vmatprep.subr.bf16.mxu0 0
      %380 = vmatpush1.bf16.msra.mxu0 0
      %381 = vmatprep.subr.bf16.mxu0 0
      %382 = vmatpush1.bf16.msra.mxu0 0
      %383 = vmatprep.subr.bf16.mxu0 0
      %384 = vmatpush1.bf16.msra.mxu0 0
      %385 = vmatprep.mubr.bf16.mxu0 0
      %386 = vmatmul.mubr.bf16.gmra.mrb[0].mxu0 %v352
      %v387 = vpop.f32.mrb[0].mxu0
      %v388 = vadd.f32 0.0, %v387
      %v389 = vpop.f32.mrb[0].mxu0
      %v390 = vpop.f32.mrb[0].mxu0
      %v391 = vpop.f32.mrb[0].mxu0
      %392 = vdwg.mxu0
      %v393 = vsub.f32 %v388, 1.0
      %v394 = vsel %vm349, %v393, -1.0
      %v395 = vld [vmem:[%s224] sm:$0xff]
      %vm396 = vcmp.eq.f32.partialorder %v394, 0.0
      %v397 = vsel %vm396, 1, 0
      %v398 = vcvt.s32.f32 %v397
      %399 = vmatprep.subr.mxu0 0.0
      %400 = vmatpush1.xpose.msra.mxu0 %v398
      %401 = vmatprep.subr.mxu0 0.0
      %402 = vmatpush1.xpose.msra.mxu0 0.0
      %403 = vmatprep.subr.mxu0 0.0
      %404 = vmatpush1.xpose.msra.mxu0 0.0
      %405 = vmatprep.subr.mxu0 0.0
      %406 = vmatpush1.xpose.msra.mxu0 0.0
      %407 = vmatprep.subr.mxu0 0.0
      %408 = vmatpush1.xpose.msra.mxu0 0.0
      %409 = vmatprep.subr.mxu0 0.0
      %410 = vmatpush1.xpose.msra.mxu0 0.0
      %411 = vmatprep.subr.mxu0 0.0
      %412 = vmatpush1.xpose.msra.mxu0 0.0
      %413 = vmatprep.subr.mxu0 0.0
      %414 = vmatpush1.xpose.msra.mxu0 0.0
      %415 = vmatprep.subr.mxu0 0.0
      %416 = vmatpush1.xpose.msra.mxu0 0.0
      %417 = vmatprep.subr.mxu0 0.0
      %418 = vmatpush1.xpose.msra.mxu0 0.0
      %419 = vmatprep.subr.mxu0 0.0
      %420 = vmatpush1.xpose.msra.mxu0 0.0
      %421 = vmatprep.subr.mxu0 0.0
      %422 = vmatpush1.xpose.msra.mxu0 0.0
      %423 = vmatprep.subr.mxu0 0.0
      %424 = vmatpush1.xpose.msra.mxu0 0.0
      %425 = vmatprep.subr.mxu0 0.0
      %426 = vmatpush1.xpose.msra.mxu0 0.0
      %427 = vmatprep.subr.mxu0 0.0
      %428 = vmatpush1.xpose.msra.mxu0 0.0
      %429 = vmatprep.subr.mxu0 0.0
      %430 = vmatpush1.xpose.msra.mxu0 0.0
      %431 = vmatprep.subr.mxu0 0.0
      %432 = vmatpush1.xpose.msra.mxu0 0.0
      %433 = vmatprep.subr.mxu0 0.0
      %434 = vmatpush1.xpose.msra.mxu0 0.0
      %435 = vmatprep.subr.mxu0 0.0
      %436 = vmatpush1.xpose.msra.mxu0 0.0
      %437 = vmatprep.subr.mxu0 0.0
      %438 = vmatpush1.xpose.msra.mxu0 0.0
      %439 = vmatprep.subr.mxu0 0.0
      %440 = vmatpush1.xpose.msra.mxu0 0.0
      %441 = vmatprep.subr.mxu0 0.0
      %442 = vmatpush1.xpose.msra.mxu0 0.0
      %443 = vmatprep.subr.mxu0 0.0
      %444 = vmatpush1.xpose.msra.mxu0 0.0
      %445 = vmatprep.subr.mxu0 0.0
      %446 = vmatpush1.xpose.msra.mxu0 0.0
      %447 = vmatprep.subr.mxu0 0.0
      %448 = vmatpush1.xpose.msra.mxu0 0.0
      %449 = vmatprep.subr.mxu0 0.0
      %450 = vmatpush1.xpose.msra.mxu0 0.0
      %451 = vmatprep.subr.mxu0 0.0
      %452 = vmatpush1.xpose.msra.mxu0 0.0
      %453 = vmatprep.subr.mxu0 0.0
      %454 = vmatpush1.xpose.msra.mxu0 0.0
      %455 = vmatprep.subr.mxu0 0.0
      %456 = vmatpush1.xpose.msra.mxu0 0.0
      %457 = vmatprep.subr.mxu0 0.0
      %458 = vmatpush1.xpose.msra.mxu0 0.0
      %459 = vmatprep.subr.mxu0 0.0
      %460 = vmatpush1.xpose.msra.mxu0 0.0
      %461 = vmatprep.subr.mxu0 0.0
      %462 = vmatpush1.xpose.msra.mxu0 0.0
      %463 = vmatprep.mubr.f32.mxu0 0.0
      %464 = vmatmul.mubr.f32.gmra.mrb[0].mxu0 %v395
      %v465 = vpop.f32.mrb[0].mxu0
      %v466 = vadd.f32 0.0, %v465
      %v467 = vpop.f32.mrb[0].mxu0
      %468 = vdwg.mxu0
      %v469 = vld [vmem:[#allocation2] sm:$0xff]
      %v470 = vadd.f32 %v469, %v466
      %471 = vst.msk [vmem:[#allocation2] sm:$0xff] %vm234, %v470
      %vm472 = vcmp.eq.f32.partialorder %v394, 1.0
      %v473 = vsel %vm472, 1, 0
      %v474 = vcvt.s32.f32 %v473
      %475 = vmatprep.subr.mxu0 0.0
      %476 = vmatpush1.xpose.msra.mxu0 %v474
      %477 = vmatprep.subr.mxu0 0.0
      %478 = vmatpush1.xpose.msra.mxu0 0.0
      %479 = vmatprep.subr.mxu0 0.0
      %480 = vmatpush1.xpose.msra.mxu0 0.0
      %481 = vmatprep.subr.mxu0 0.0
      %482 = vmatpush1.xpose.msra.mxu0 0.0
      %483 = vmatprep.subr.mxu0 0.0
      %484 = vmatpush1.xpose.msra.mxu0 0.0
      %485 = vmatprep.subr.mxu0 0.0
      %486 = vmatpush1.xpose.msra.mxu0 0.0
      %487 = vmatprep.subr.mxu0 0.0
      %488 = vmatpush1.xpose.msra.mxu0 0.0
      %489 = vmatprep.subr.mxu0 0.0
      %490 = vmatpush1.xpose.msra.mxu0 0.0
      %491 = vmatprep.subr.mxu0 0.0
      %492 = vmatpush1.xpose.msra.mxu0 0.0
      %493 = vmatprep.subr.mxu0 0.0
      %494 = vmatpush1.xpose.msra.mxu0 0.0
      %495 = vmatprep.subr.mxu0 0.0
      %496 = vmatpush1.xpose.msra.mxu0 0.0
      %497 = vmatprep.subr.mxu0 0.0
      %498 = vmatpush1.xpose.msra.mxu0 0.0
      %499 = vmatprep.subr.mxu0 0.0
      %500 = vmatpush1.xpose.msra.mxu0 0.0
      %501 = vmatprep.subr.mxu0 0.0
      %502 = vmatpush1.xpose.msra.mxu0 0.0
      %503 = vmatprep.subr.mxu0 0.0
      %504 = vmatpush1.xpose.msra.mxu0 0.0
      %505 = vmatprep.subr.mxu0 0.0
      %506 = vmatpush1.xpose.msra.mxu0 0.0
      %507 = vmatprep.subr.mxu0 0.0
      %508 = vmatpush1.xpose.msra.mxu0 0.0
      %509 = vmatprep.subr.mxu0 0.0
      %510 = vmatpush1.xpose.msra.mxu0 0.0
      %511 = vmatprep.subr.mxu0 0.0
      %512 = vmatpush1.xpose.msra.mxu0 0.0
      %513 = vmatprep.subr.mxu0 0.0
      %514 = vmatpush1.xpose.msra.mxu0 0.0
      %515 = vmatprep.subr.mxu0 0.0
      %516 = vmatpush1.xpose.msra.mxu0 0.0
      %517 = vmatprep.subr.mxu0 0.0
      %518 = vmatpush1.xpose.msra.mxu0 0.0
      %519 = vmatprep.subr.mxu0 0.0
      %520 = vmatpush1.xpose.msra.mxu0 0.0
      %521 = vmatprep.subr.mxu0 0.0
      %522 = vmatpush1.xpose.msra.mxu0 0.0
      %523 = vmatprep.subr.mxu0 0.0
      %524 = vmatpush1.xpose.msra.mxu0 0.0
      %525 = vmatprep.subr.mxu0 0.0
      %526 = vmatpush1.xpose.msra.mxu0 0.0
      %527 = vmatprep.subr.mxu0 0.0
      %528 = vmatpush1.xpose.msra.mxu0 0.0
      %529 = vmatprep.subr.mxu0 0.0
      %530 = vmatpush1.xpose.msra.mxu0 0.0
      %531 = vmatprep.subr.mxu0 0.0
      %532 = vmatpush1.xpose.msra.mxu0 0.0
      %533 = vmatprep.subr.mxu0 0.0
      %534 = vmatpush1.xpose.msra.mxu0 0.0
      %535 = vmatprep.subr.mxu0 0.0
      %536 = vmatpush1.xpose.msra.mxu0 0.0
      %537 = vmatprep.subr.mxu0 0.0
      %538 = vmatpush1.xpose.msra.mxu0 0.0
      %539 = vmatprep.mubr.f32.mxu0 0.0
      %540 = vmatmul.mubr.f32.gmra.mrb[0].mxu0 %v395
      %v541 = vpop.f32.mrb[0].mxu0
      %v542 = vadd.f32 0.0, %v541
      %v543 = vpop.f32.mrb[0].mxu0
      %544 = vdwg.mxu0
      %s545 = scalar_lea.vmem [#allocation2], 8
      %v546 = vld [vmem:[%s545] sm:$0xff]
      %v547 = vadd.f32 %v546, %v542
      %548 = vst.msk [vmem:[%s545] sm:$0xff] %vm234, %v547
      %vm549 = vcmp.eq.f32.partialorder %v394, 2.0
      %v550 = vsel %vm549, 1, 0
      %v551 = vcvt.s32.f32 %v550
      %552 = vmatprep.subr.mxu0 0.0
      %553 = vmatpush1.xpose.msra.mxu0 %v551
      %554 = vmatprep.subr.mxu0 0.0
      %555 = vmatpush1.xpose.msra.mxu0 0.0
      %556 = vmatprep.subr.mxu0 0.0
      %557 = vmatpush1.xpose.msra.mxu0 0.0
      %558 = vmatprep.subr.mxu0 0.0
      %559 = vmatpush1.xpose.msra.mxu0 0.0
      %560 = vmatprep.subr.mxu0 0.0
      %561 = vmatpush1.xpose.msra.mxu0 0.0
      %562 = vmatprep.subr.mxu0 0.0
      %563 = vmatpush1.xpose.msra.mxu0 0.0
      %564 = vmatprep.subr.mxu0 0.0
      %565 = vmatpush1.xpose.msra.mxu0 0.0
      %566 = vmatprep.subr.mxu0 0.0
      %567 = vmatpush1.xpose.msra.mxu0 0.0
      %568 = vmatprep.subr.mxu0 0.0
      %569 = vmatpush1.xpose.msra.mxu0 0.0
      %570 = vmatprep.subr.mxu0 0.0
      %571 = vmatpush1.xpose.msra.mxu0 0.0
      %572 = vmatprep.subr.mxu0 0.0
      %573 = vmatpush1.xpose.msra.mxu0 0.0
      %574 = vmatprep.subr.mxu0 0.0
      %575 = vmatpush1.xpose.msra.mxu0 0.0
      %576 = vmatprep.subr.mxu0 0.0
      %577 = vmatpush1.xpose.msra.mxu0 0.0
      %578 = vmatprep.subr.mxu0 0.0
      %579 = vmatpush1.xpose.msra.mxu0 0.0
      %580 = vmatprep.subr.mxu0 0.0
      %581 = vmatpush1.xpose.msra.mxu0 0.0
      %582 = vmatprep.subr.mxu0 0.0
      %583 = vmatpush1.xpose.msra.mxu0 0.0
      %584 = vmatprep.subr.mxu0 0.0
      %585 = vmatpush1.xpose.msra.mxu0 0.0
      %586 = vmatprep.subr.mxu0 0.0
      %587 = vmatpush1.xpose.msra.mxu0 0.0
      %588 = vmatprep.subr.mxu0 0.0
      %589 = vmatpush1.xpose.msra.mxu0 0.0
      %590 = vmatprep.subr.mxu0 0.0
      %591 = vmatpush1.xpose.msra.mxu0 0.0
      %592 = vmatprep.subr.mxu0 0.0
      %593 = vmatpush1.xpose.msra.mxu0 0.0
      %594 = vmatprep.subr.mxu0 0.0
      %595 = vmatpush1.xpose.msra.mxu0 0.0
      %596 = vmatprep.subr.mxu0 0.0
      %597 = vmatpush1.xpose.msra.mxu0 0.0
      %598 = vmatprep.subr.mxu0 0.0
      %599 = vmatpush1.xpose.msra.mxu0 0.0
      %600 = vmatprep.subr.mxu0 0.0
      %601 = vmatpush1.xpose.msra.mxu0 0.0
      %602 = vmatprep.subr.mxu0 0.0
      %603 = vmatpush1.xpose.msra.mxu0 0.0
      %604 = vmatprep.subr.mxu0 0.0
      %605 = vmatpush1.xpose.msra.mxu0 0.0
      %606 = vmatprep.subr.mxu0 0.0
      %607 = vmatpush1.xpose.msra.mxu0 0.0
      %608 = vmatprep.subr.mxu0 0.0
      %609 = vmatpush1.xpose.msra.mxu0 0.0
      %610 = vmatprep.subr.mxu0 0.0
      %611 = vmatpush1.xpose.msra.mxu0 0.0
      %612 = vmatprep.subr.mxu0 0.0
      %613 = vmatpush1.xpose.msra.mxu0 0.0
      %614 = vmatprep.subr.mxu0 0.0
      %615 = vmatpush1.xpose.msra.mxu0 0.0
      %616 = vmatprep.mubr.f32.mxu0 0.0
      %617 = vmatmul.mubr.f32.gmra.mrb[0].mxu0 %v395
      %v618 = vpop.f32.mrb[0].mxu0
      %v619 = vadd.f32 0.0, %v618
      %v620 = vpop.f32.mrb[0].mxu0
      %621 = vdwg.mxu0
      %s622 = scalar_lea.vmem [#allocation2], 16
      %v623 = vld [vmem:[%s622] sm:$0xff]
      %v624 = vadd.f32 %v623, %v619
      %625 = vst.msk [vmem:[%s622] sm:$0xff] %vm234, %v624
      %vm626 = vcmp.eq.f32.partialorder %v394, 3.0
      %v627 = vsel %vm626, 1, 0
      %v628 = vcvt.s32.f32 %v627
      %629 = vmatprep.subr.mxu0 0.0
      %630 = vmatpush1.xpose.msra.mxu0 %v628
      %631 = vmatprep.subr.mxu0 0.0
      %632 = vmatpush1.xpose.msra.mxu0 0.0
      %633 = vmatprep.subr.mxu0 0.0
      %634 = vmatpush1.xpose.msra.mxu0 0.0
      %635 = vmatprep.subr.mxu0 0.0
      %636 = vmatpush1.xpose.msra.mxu0 0.0
      %637 = vmatprep.subr.mxu0 0.0
      %638 = vmatpush1.xpose.msra.mxu0 0.0
      %639 = vmatprep.subr.mxu0 0.0
      %640 = vmatpush1.xpose.msra.mxu0 0.0
      %641 = vmatprep.subr.mxu0 0.0
      %642 = vmatpush1.xpose.msra.mxu0 0.0
      %643 = vmatprep.subr.mxu0 0.0
      %644 = vmatpush1.xpose.msra.mxu0 0.0
      %645 = vmatprep.subr.mxu0 0.0
      %646 = vmatpush1.xpose.msra.mxu0 0.0
      %647 = vmatprep.subr.mxu0 0.0
      %648 = vmatpush1.xpose.msra.mxu0 0.0
      %649 = vmatprep.subr.mxu0 0.0
      %650 = vmatpush1.xpose.msra.mxu0 0.0
      %651 = vmatprep.subr.mxu0 0.0
      %652 = vmatpush1.xpose.msra.mxu0 0.0
      %653 = vmatprep.subr.mxu0 0.0
      %654 = vmatpush1.xpose.msra.mxu0 0.0
      %655 = vmatprep.subr.mxu0 0.0
      %656 = vmatpush1.xpose.msra.mxu0 0.0
      %657 = vmatprep.subr.mxu0 0.0
      %658 = vmatpush1.xpose.msra.mxu0 0.0
      %659 = vmatprep.subr.mxu0 0.0
      %660 = vmatpush1.xpose.msra.mxu0 0.0
      %661 = vmatprep.subr.mxu0 0.0
      %662 = vmatpush1.xpose.msra.mxu0 0.0
      %663 = vmatprep.subr.mxu0 0.0
      %664 = vmatpush1.xpose.msra.mxu0 0.0
      %665 = vmatprep.subr.mxu0 0.0
      %666 = vmatpush1.xpose.msra.mxu0 0.0
      %667 = vmatprep.subr.mxu0 0.0
      %668 = vmatpush1.xpose.msra.mxu0 0.0
      %669 = vmatprep.subr.mxu0 0.0
      %670 = vmatpush1.xpose.msra.mxu0 0.0
      %671 = vmatprep.subr.mxu0 0.0
      %672 = vmatpush1.xpose.msra.mxu0 0.0
      %673 = vmatprep.subr.mxu0 0.0
      %674 = vmatpush1.xpose.msra.mxu0 0.0
      %675 = vmatprep.subr.mxu0 0.0
      %676 = vmatpush1.xpose.msra.mxu0 0.0
      %677 = vmatprep.subr.mxu0 0.0
      %678 = vmatpush1.xpose.msra.mxu0 0.0
      %679 = vmatprep.subr.mxu0 0.0
      %680 = vmatpush1.xpose.msra.mxu0 0.0
      %681 = vmatprep.subr.mxu0 0.0
      %682 = vmatpush1.xpose.msra.mxu0 0.0
      %683 = vmatprep.subr.mxu0 0.0
      %684 = vmatpush1.xpose.msra.mxu0 0.0
      %685 = vmatprep.subr.mxu0 0.0
      %686 = vmatpush1.xpose.msra.mxu0 0.0
      %687 = vmatprep.subr.mxu0 0.0
      %688 = vmatpush1.xpose.msra.mxu0 0.0
      %689 = vmatprep.subr.mxu0 0.0
      %690 = vmatpush1.xpose.msra.mxu0 0.0
      %691 = vmatprep.subr.mxu0 0.0
      %692 = vmatpush1.xpose.msra.mxu0 0.0
      %693 = vmatprep.mubr.f32.mxu0 0.0
      %694 = vmatmul.mubr.f32.gmra.mrb[0].mxu0 %v395
      %v695 = vpop.f32.mrb[0].mxu0
      %v696 = vadd.f32 0.0, %v695
      %v697 = vpop.f32.mrb[0].mxu0
      %698 = vdwg.mxu0
      %s699 = scalar_lea.vmem [#allocation2], 24
      %v700 = vld [vmem:[%s699] sm:$0xff]
      %v701 = vadd.f32 %v700, %v696
      %702 = vst.msk [vmem:[%s699] sm:$0xff] %vm234, %v701
      %v703 = vld [vmem:[%s224] sm:$0xff]
      %v704 = vld [vmem:[#allocation2] sm:$0xff]
      %v705 = vlaneseq
      %v706 = vshrl.u32 %v705, 7
      %v707 = vsub.s32 7, %v706
      %v708 = vrot.slane %v704, %v707
      %v709 = vmul.f32 %v704, %v708
      %v710 = vsub.f32 1.0, %v704
      %712 = vset.pattern.permute.xlu0 0
      %713 = vperm.xlu0 %712, %v703
      %v714 = vpop.permute.xlu0 %713
      %v716 = vlaneseq
      %v717 = vshrl.u32 %v716, 7
      %v718 = vsub.s32 7, %v717
      %v719 = vrot.slane %v710, %v718
      %v720 = vmul.f32 %v714, %v719
      %v721 = vadd.f32 %v709, %v720
      %vm722 = vcmask 63488
      %723 = vst.msk [vmem:[%s232] sm:$0x7f] %vm722, %v721
      loop: start=1, step=1, limit=4
      $region33: #{tpu_custom_call.1} parent=31 // loop_pre_header
        _
      $region34: #{tpu_custom_call.1} parent=31 // loop_header
        %s725 = sphi 1, %s729
        %p726 = scmp.ge.s32.totalorder %s725, 4
      $region35: #{tpu_custom_call.1} parent=31 // loop_header_branch
        %728 = sbr.rel (%p726) target = $region39
      $region36: #{tpu_custom_call.1} parent=31 // loop_body
        %s730 = smul.u32 %s725, 8
        %s731 = scalar_lea.vmem [#allocation2], %s730
        %v732 = vld [vmem:[%s731] sm:$0xff]
        %v733 = vlaneseq
        %v734 = vshrl.u32 %v733, 7
        %v735 = vsub.s32 7, %v734
        %v736 = vrot.slane %v732, %v735
        %v737 = vmul.f32 %v732, %v736
        %v738 = vsub.f32 1.0, %v732
        %v739 = vlaneseq
        %v740 = vshrl.u32 %v739, 7
        %v741 = vsub.s32 7, %v740
        %v742 = vrot.slane %v738, %v741
        %v743 = vmul.f32 %v721, %v742
        %v744 = vadd.f32 %v737, %v743
        %s745 = scalar_lea.vmem %s232, %s730
        %746 = vst.msk [vmem:[%s745] sm:$0x7f] %vm722, %v744
      $region37: #{tpu_custom_call.1} parent=31 // loop_footer
        %s729 = sadd.s32 1, %s725
      $region38: #{tpu_custom_call.1} parent=31 // loop_footer_branch
        %724 = sbr.rel target = $region34
      $region39: #{tpu_custom_call.1} parent=31 // loop_exit
        _
      %p747 = scmp.lt.s32.totalorder %s18, 1
      %s748 = scalar_select %p747, %s18, 1
      %p749 = scmp.lt.s32.totalorder %s19, 0
      %s750 = scalar_select %p749, %s19, 0
      %s751 = smul.addr %s748, 4
      %s752 = sadd.s32 %s750, %s751
      %s753 = smul.addr %s752, 8
      %s754 = scalar_lea.vmem %s3, %s753
      // Predicated region
      $region40: #{tpu_custom_call.1} parent=31 // pred_check
        %p755 = pneg %p126
      $region41: #{tpu_custom_call.1} parent=31 // pred_check_branch
        %757 = sbr.rel (%p755) target = $region43
      $region42: #{tpu_custom_call.1} parent=31 // pred_region
        _
      $region43: #{tpu_custom_call.1} parent=31 // pred_fallthru
        _
    $region32: #{tpu_custom_call.1} parent=5 // pred_fallthru
      _
    %p758 = scmp.le.s32.totalorder 2, %s9
    // Predicated region
    $region44: #{tpu_custom_call.1} parent=5 // pred_check
      %p759 = pneg %p758
    $region45: #{tpu_custom_call.1} parent=5 // pred_check_branch
      %761 = sbr.rel (%p759) target = $region47
    $region46: #{tpu_custom_call.1} parent=5 // pred_region
      %s762 = ssub.s32 %s9, 2
      // Predicated region
      $region48: #{tpu_custom_call.1} parent=46 // pred_check
        %p763 = pneg %p132
      $region49: #{tpu_custom_call.1} parent=46 // pred_check_branch
        %765 = sbr.rel (%p763) target = $region51
      $region50: #{tpu_custom_call.1} parent=46 // pred_region
        %p766 = scmp.lt.s32.totalorder %s20, 1
        %s767 = scalar_select %p766, %s20, 1
        %p768 = scmp.lt.s32.totalorder %s21, 0
        %s769 = scalar_select %p768, %s21, 0
        %s770 = smul.addr %s767, 4
        %s771 = sadd.s32 %s769, %s770
        %s772 = smul.addr %s771, 8
        %s773 = scalar_lea.vmem %s3, %s772
      $region51: #{tpu_custom_call.1} parent=46 // pred_fallthru
        _
    $region47: #{tpu_custom_call.1} parent=5 // pred_fallthru
      _
  $region6: #{tpu_custom_call.1} parent=0 // loop_footer
    %s13 = sadd.s32 1, %s9
  $region7: #{tpu_custom_call.1} parent=0 // loop_footer_branch
    %8 = sbr.rel target = $region3
  $region8: #{tpu_custom_call.1} parent=0 // loop_exit
    _

</llo_original>
